<compile_context>
chip_gen: v7x
topology: tpu7x:2x2x1
jax: 0.10.0
libtpu: 0.0.40
codegen_flags: <defaults>
</compile_context>

<pallas_src>
import functools

import jax
import jax.numpy as jnp
from jax.experimental import pallas as pl
from jax.experimental.pallas import tpu as pltpu


LANE = 128


def _round_up(x, m):
    return ((x + m - 1) // m) * m


def _cdiv(a, b):
    return -(-a // b)


# --------------------------------------------------------------------------
# Kernel: 4 fused matmuls over one batch tile.
# --------------------------------------------------------------------------
def actor_critic_kernel(
    obs_ref,                          # (TB, obs_dim)  -- unpadded lanes
    w1_ref, b1_ref, w2_ref, b2_ref,   # shared trunk (hidden padded to 128)
    wh1_ref, bh1_ref,                 # fused actor|critic hidden (128, 128)
    wh2_ref, bh2_ref,                 # block-diag actor|critic out (128, OUT_PAD)
    out_ref,                          # (TB, OUT_PAD) packed [logits | value | 0...]
):
    cdt = w1_ref.dtype                # compute (matmul operand) dtype: f32 or bf16
    x = obs_ref[...].astype(cdt)

    # shared_module: Linear -> ReLU -> Linear -> ReLU  (bias+ReLU stay f32)
    z = jnp.maximum(
        jnp.dot(x, w1_ref[...], preferred_element_type=jnp.float32) + b1_ref[...],
        0.0)
    z = jnp.maximum(
        jnp.dot(z.astype(cdt), w2_ref[...],
                preferred_element_type=jnp.float32) + b2_ref[...],
        0.0)

    # fused actor/critic hidden layers: actor in lanes [0:64], critic [64:128]
    ac = jnp.maximum(
        jnp.dot(z.astype(cdt), wh1_ref[...],
                preferred_element_type=jnp.float32) + bh1_ref[...],
        0.0)

    # fused block-diagonal output layer -> [logits | value | 0...]
    out = jnp.dot(ac.astype(cdt), wh2_ref[...],
                  preferred_element_type=jnp.float32) + bh2_ref[...]
    out_ref[...] = out.astype(out_ref.dtype)


# --------------------------------------------------------------------------
# Param packing: fuse heads at 64-lane offsets, pad hidden to 128 lanes.
# Weights are stored in `compute_dtype`; biases stay f32 (VPU path stays f32).
# --------------------------------------------------------------------------
def pack_params(p, obs_dim, action_dim, hidden=64, compute_dtype=jnp.float32):
    H = _round_up(hidden, LANE)                 # trunk / fused-head lane width
    OUT_PAD = _round_up(action_dim + 1, LANE)   # packed [logits | value] width
    assert 2 * hidden <= H, "head packing at 64-lane offsets needs 2*hidden <= 128"
    wdt = compute_dtype

    def pad2(x, shape, dtype):
        out = jnp.zeros(shape, dtype)
        return out.at[: x.shape[0], : x.shape[1]].set(x.astype(dtype))

    packed = {
        # w1 keeps K = obs_dim (no lane padding of the contraction dim).
        "w1": pad2(p["w1"], (obs_dim, H), wdt),
        "b1": pad2(p["b1"], (1, H), jnp.float32),
        "w2": pad2(p["w2"], (H, H), wdt),
        "b2": pad2(p["b2"], (1, H), jnp.float32),
    }

    # Fused head hidden layers: actor cols [0:hidden), critic cols [hidden:2*hidden).
    wh1 = jnp.zeros((H, H), wdt)
    wh1 = wh1.at[:hidden, :hidden].set(p["wa1"].astype(wdt))
    wh1 = wh1.at[:hidden, hidden:2 * hidden].set(p["wc1"].astype(wdt))
    bh1 = jnp.zeros((1, H), jnp.float32)
    bh1 = bh1.at[:, :hidden].set(p["ba1"])
    bh1 = bh1.at[:, hidden:2 * hidden].set(p["bc1"])

    # Fused block-diagonal output: actor rows [0:hidden) -> logits cols,
    # critic rows [hidden:2*hidden) -> value col.
    wh2 = jnp.zeros((H, OUT_PAD), wdt)
    wh2 = wh2.at[:hidden, :action_dim].set(p["wa2"].astype(wdt))
    wh2 = wh2.at[hidden:2 * hidden, action_dim:action_dim + 1].set(
        p["wc2"].astype(wdt))
    bh2 = jnp.zeros((1, OUT_PAD), jnp.float32)
    bh2 = bh2.at[:, :action_dim].set(p["ba2"])
    bh2 = bh2.at[:, action_dim:action_dim + 1].set(p["bc2"])

    packed.update({"wh1": wh1, "bh1": bh1, "wh2": wh2, "bh2": bh2})
    return packed


# --------------------------------------------------------------------------
# Batch-tile selection: big tiles (amortize ~0.35us/step), >=2 grid steps when
# possible (v7x 2-TC megacore), padded-row waste bounded to <=8 rows per step.
# --------------------------------------------------------------------------
def _choose_tiles(B, tb_max):
    B8 = _round_up(max(B, 1), 8)
    cap = max(8, (min(tb_max, B8) // 8) * 8)
    n = _cdiv(B8, cap)
    if B8 >= 16:
        n = max(n, 2)              # let the parallel axis span both TCs on v7x
    tb = _round_up(_cdiv(B8, n), 8)
    return tb, n * tb, n


# --------------------------------------------------------------------------
# Wrapper: batch grid, resident weights, lane-dense packed output.
# --------------------------------------------------------------------------
@functools.partial(jax.jit, static_argnames=("action_dim", "tb_max"))
def actor_critic_forward(obs, packed, *, action_dim, tb_max=1024):
    """obs: [B, obs_dim]. Returns (logits [B, action_dim], value [B, 1])."""
    B, obs_dim = obs.shape
    H = packed["w1"].shape[1]
    OUT_PAD = packed["wh2"].shape[1]
    out_dtype = packed["w1"].dtype   # packed output in compute dtype (f32 or bf16)

    TB, B_pad, n_steps = _choose_tiles(B, tb_max)

    # Only pad the batch dim (rows); lanes stay at obs_dim.
    if B_pad != B:
        obs_in = jnp.zeros((B_pad, obs_dim), obs.dtype).at[:B].set(obs)
    else:
        obs_in = obs

    batch_spec = lambda shape: pl.BlockSpec(shape, lambda i: (i, 0))
    const_spec = lambda shape: pl.BlockSpec(shape, lambda i: (0, 0))

    out = pl.pallas_call(
        actor_critic_kernel,
        out_shape=jax.ShapeDtypeStruct((B_pad, OUT_PAD), out_dtype),
        grid_spec=pltpu.PrefetchScalarGridSpec(
            num_scalar_prefetch=0,
            grid=(n_steps,),
            in_specs=[
                batch_spec((TB, obs_dim)),       # obs tile (streamed, unpadded lanes)
                const_spec((obs_dim, H)),        # w1 (resident)
                const_spec((1, H)),              # b1
                const_spec((H, H)),              # w2
                const_spec((1, H)),              # b2
                const_spec((H, H)),              # fused head-1 weight
                const_spec((1, H)),              # fused head-1 bias
                const_spec((H, OUT_PAD)),        # block-diag head-2 weight
                const_spec((1, OUT_PAD)),        # block-diag head-2 bias
            ],
            out_specs=batch_spec((TB, OUT_PAD)),
        ),
        compiler_params=pltpu.CompilerParams(
            dimension_semantics=("parallel",),   # megacore-shard the batch axis
        ),
    )(
        obs_in,
        packed["w1"], packed["b1"], packed["w2"], packed["b2"],
        packed["wh1"], packed["bh1"], packed["wh2"], packed["bh2"],
    )

    # Downstream code could consume the packed (B, 128) block directly (e.g.
    # masked softmax over lanes [0:action_dim]); slice here to keep the
    # (logits, value) API of the original module.
    logits = out[:B, :action_dim]
    value = out[:B, action_dim:action_dim + 1]
    return logits, value


# --------------------------------------------------------------------------
# Init / reference (PyTorch nn.Linear semantics; weights stored as (in, out)).
# --------------------------------------------------------------------------
def init_params(key, obs_dim, action_dim, hidden=64):
    def linear(key, fan_in, fan_out):
        kw, kb = jax.random.split(key)
        bound = 1.0 / jnp.sqrt(fan_in)
        w = jax.random.uniform(kw, (fan_in, fan_out), jnp.float32, -bound, bound)
        b = jax.random.uniform(kb, (1, fan_out), jnp.float32, -bound, bound)
        return w, b

    keys = jax.random.split(key, 6)
    p = {}
    p["w1"], p["b1"] = linear(keys[0], obs_dim, hidden)
    p["w2"], p["b2"] = linear(keys[1], hidden, hidden)
    p["wa1"], p["ba1"] = linear(keys[2], hidden, hidden)
    p["wa2"], p["ba2"] = linear(keys[3], hidden, action_dim)
    p["wc1"], p["bc1"] = linear(keys[4], hidden, hidden)
    p["wc2"], p["bc2"] = linear(keys[5], hidden, 1)
    return p


def reference_forward(obs, p):
    relu = lambda v: jnp.maximum(v, 0.0)
    z = relu(obs @ p["w1"] + p["b1"])
    z = relu(z @ p["w2"] + p["b2"])
    a = relu(z @ p["wa1"] + p["ba1"])
    logits = a @ p["wa2"] + p["ba2"]
    c = relu(z @ p["wc1"] + p["bc1"])
    value = c @ p["wc2"] + p["bc2"]
    return logits, value


if __name__ == "__main__":
    B, OBS_DIM, ACTION_DIM = 8, 16, 4

    key = jax.random.PRNGKey(0)
    k_obs, k_params = jax.random.split(key)
    obs = jax.random.normal(k_obs, (B, OBS_DIM), jnp.float32)
    params = init_params(k_params, OBS_DIM, ACTION_DIM)
    ref_logits, ref_value = reference_forward(obs, params)

    # Exact f32 path (the padded / fused math is bit-identical to unpadded).
    packed_f32 = pack_params(params, OBS_DIM, ACTION_DIM,
                             compute_dtype=jnp.float32)
    logits, value = actor_critic_forward(obs, packed_f32, action_dim=ACTION_DIM)
    jax.block_until_ready((logits, value))
    assert logits.shape == (B, ACTION_DIM) and value.shape == (B, 1)
    assert jnp.allclose(logits, ref_logits, atol=1e-5, rtol=1e-5)
    assert jnp.allclose(value, ref_value, atol=1e-5, rtol=1e-5)

    # bf16-operand path (f32 MXU accumulation, f32 bias/ReLU) — the recommended
    # config on v6e/v7x; relaxed tolerance per bf16 mantissa.
    packed_bf16 = pack_params(params, OBS_DIM, ACTION_DIM,
                              compute_dtype=jnp.bfloat16)
    logits_b, value_b = actor_critic_forward(obs, packed_bf16,
                                             action_dim=ACTION_DIM)
    jax.block_until_ready((logits_b, value_b))
    assert jnp.allclose(logits_b.astype(jnp.float32), ref_logits,
                        atol=2e-2, rtol=2e-2)
    assert jnp.allclose(value_b.astype(jnp.float32), ref_value,
                        atol=2e-2, rtol=2e-2)

    print("KERNEL_OK")
</pallas_src>

<mosaic_0001>
module attributes {stable_mosaic.version = 11 : i64} {
  func.func @actor_critic_kernel(%arg0: i32, %arg1: memref<8x16xf32, #tpu.memory_space<vmem>>, %arg2: memref<16x128xf32, #tpu.memory_space<vmem>>, %arg3: memref<1x128xf32, #tpu.memory_space<vmem>>, %arg4: memref<128x128xf32, #tpu.memory_space<vmem>>, %arg5: memref<1x128xf32, #tpu.memory_space<vmem>>, %arg6: memref<128x128xf32, #tpu.memory_space<vmem>>, %arg7: memref<1x128xf32, #tpu.memory_space<vmem>>, %arg8: memref<128x128xf32, #tpu.memory_space<vmem>>, %arg9: memref<1x128xf32, #tpu.memory_space<vmem>>, %arg10: memref<8x128xf32, #tpu.memory_space<vmem>>) attributes {dimension_semantics = [#tpu.dimension_semantics<parallel>], iteration_bounds = array<i64: 1>, scalar_prefetch = 0 : i64, scratch_operands = 0 : i64, tpu.core_type = #tpu.core_type<tc>, window_params = [{transform_indices = @transform_0, window_bounds = array<i64: 8, 16>}, {pipeline_mode = #tpu.pipeline_mode<synchronous>, transform_indices = @transform_1, window_bounds = array<i64: 16, 128>}, {pipeline_mode = #tpu.pipeline_mode<synchronous>, transform_indices = @transform_2, window_bounds = array<i64: 1, 128>}, {pipeline_mode = #tpu.pipeline_mode<synchronous>, transform_indices = @transform_3, window_bounds = array<i64: 128, 128>}, {pipeline_mode = #tpu.pipeline_mode<synchronous>, transform_indices = @transform_4, window_bounds = array<i64: 1, 128>}, {pipeline_mode = #tpu.pipeline_mode<synchronous>, transform_indices = @transform_5, window_bounds = array<i64: 128, 128>}, {pipeline_mode = #tpu.pipeline_mode<synchronous>, transform_indices = @transform_6, window_bounds = array<i64: 1, 128>}, {pipeline_mode = #tpu.pipeline_mode<synchronous>, transform_indices = @transform_7, window_bounds = array<i64: 128, 128>}, {pipeline_mode = #tpu.pipeline_mode<synchronous>, transform_indices = @transform_8, window_bounds = array<i64: 1, 128>}, {transform_indices = @transform_9, window_bounds = array<i64: 8, 128>}]} {
    %c0 = arith.constant 0 : index
    %c0_0 = arith.constant 0 : index
    %0 = vector.load %arg1[%c0, %c0_0] : memref<8x16xf32, #tpu.memory_space<vmem>>, vector<8x16xf32>
    %c0_1 = arith.constant 0 : index
    %c0_2 = arith.constant 0 : index
    %1 = vector.load %arg2[%c0_1, %c0_2] : memref<16x128xf32, #tpu.memory_space<vmem>>, vector<16x128xf32>
    %cst = arith.constant dense<0.000000e+00> : vector<8x128xf32>
    %2 = tpu.matmul %0, %1, %cst {dimension_numbers = #tpu.dot_dimension_numbers<[1], [0], [0], [1], [0, 0, 1, 1], [], []>} : vector<8x16xf32>, vector<16x128xf32>, vector<8x128xf32> -> vector<8x128xf32>
    %c0_3 = arith.constant 0 : index
    %c0_4 = arith.constant 0 : index
    %3 = vector.load %arg3[%c0_3, %c0_4] : memref<1x128xf32, #tpu.memory_space<vmem>>, vector<1x128xf32>
    %4 = vector.broadcast %3 : vector<1x128xf32> to vector<8x128xf32>
    %5 = arith.addf %2, %4 : vector<8x128xf32>
    %cst_5 = arith.constant 0.000000e+00 : f32
    %6 = vector.broadcast %cst_5 : f32 to vector<8x128xf32>
    %7 = arith.maximumf %5, %6 : vector<8x128xf32>
    %c0_6 = arith.constant 0 : index
    %c0_7 = arith.constant 0 : index
    %8 = vector.load %arg4[%c0_6, %c0_7] : memref<128x128xf32, #tpu.memory_space<vmem>>, vector<128x128xf32>
    %cst_8 = arith.constant dense<0.000000e+00> : vector<8x128xf32>
    %9 = tpu.matmul %7, %8, %cst_8 {dimension_numbers = #tpu.dot_dimension_numbers<[1], [0], [0], [1], [0, 0, 1, 1], [], []>} : vector<8x128xf32>, vector<128x128xf32>, vector<8x128xf32> -> vector<8x128xf32>
    %c0_9 = arith.constant 0 : index
    %c0_10 = arith.constant 0 : index
    %10 = vector.load %arg5[%c0_9, %c0_10] : memref<1x128xf32, #tpu.memory_space<vmem>>, vector<1x128xf32>
    %11 = vector.broadcast %10 : vector<1x128xf32> to vector<8x128xf32>
    %12 = arith.addf %9, %11 : vector<8x128xf32>
    %cst_11 = arith.constant 0.000000e+00 : f32
    %13 = vector.broadcast %cst_11 : f32 to vector<8x128xf32>
    %14 = arith.maximumf %12, %13 : vector<8x128xf32>
    %c0_12 = arith.constant 0 : index
    %c0_13 = arith.constant 0 : index
    %15 = vector.load %arg6[%c0_12, %c0_13] : memref<128x128xf32, #tpu.memory_space<vmem>>, vector<128x128xf32>
    %cst_14 = arith.constant dense<0.000000e+00> : vector<8x128xf32>
    %16 = tpu.matmul %14, %15, %cst_14 {dimension_numbers = #tpu.dot_dimension_numbers<[1], [0], [0], [1], [0, 0, 1, 1], [], []>} : vector<8x128xf32>, vector<128x128xf32>, vector<8x128xf32> -> vector<8x128xf32>
    %c0_15 = arith.constant 0 : index
    %c0_16 = arith.constant 0 : index
    %17 = vector.load %arg7[%c0_15, %c0_16] : memref<1x128xf32, #tpu.memory_space<vmem>>, vector<1x128xf32>
    %18 = vector.broadcast %17 : vector<1x128xf32> to vector<8x128xf32>
    %19 = arith.addf %16, %18 : vector<8x128xf32>
    %cst_17 = arith.constant 0.000000e+00 : f32
    %20 = vector.broadcast %cst_17 : f32 to vector<8x128xf32>
    %21 = arith.maximumf %19, %20 : vector<8x128xf32>
    %c0_18 = arith.constant 0 : index
    %c0_19 = arith.constant 0 : index
    %22 = vector.load %arg8[%c0_18, %c0_19] : memref<128x128xf32, #tpu.memory_space<vmem>>, vector<128x128xf32>
    %cst_20 = arith.constant dense<0.000000e+00> : vector<8x128xf32>
    %23 = tpu.matmul %21, %22, %cst_20 {dimension_numbers = #tpu.dot_dimension_numbers<[1], [0], [0], [1], [0, 0, 1, 1], [], []>} : vector<8x128xf32>, vector<128x128xf32>, vector<8x128xf32> -> vector<8x128xf32>
    %c0_21 = arith.constant 0 : index
    %c0_22 = arith.constant 0 : index
    %24 = vector.load %arg9[%c0_21, %c0_22] : memref<1x128xf32, #tpu.memory_space<vmem>>, vector<1x128xf32>
    %25 = vector.broadcast %24 : vector<1x128xf32> to vector<8x128xf32>
    %26 = arith.addf %23, %25 : vector<8x128xf32>
    %c0_23 = arith.constant 0 : index
    %c0_24 = arith.constant 0 : index
    %27 = vector.load %arg10[%c0_23, %c0_24] : memref<8x128xf32, #tpu.memory_space<vmem>>, vector<8x128xf32>
    tpu.vector_store %arg10[%c0_23, %c0_24], %26 {strides = array<i32>} : memref<8x128xf32, #tpu.memory_space<vmem>>, vector<8x128xf32>,
    return
  }
  func.func @transform_0(%arg0: i32) -> (i32, i32) {
    %c0_i32 = arith.constant 0 : i32
    %c0_i32_0 = arith.constant 0 : i32
    return %arg0, %c0_i32 : i32, i32
  }
  func.func @transform_1(%arg0: i32) -> (i32, i32) {
    %c0_i32 = arith.constant 0 : i32
    %c0_i32_0 = arith.constant 0 : i32
    %c0_i32_1 = arith.constant 0 : i32
    return %c0_i32, %c0_i32_0 : i32, i32
  }
  func.func @transform_2(%arg0: i32) -> (i32, i32) {
    %c0_i32 = arith.constant 0 : i32
    %c0_i32_0 = arith.constant 0 : i32
    %c0_i32_1 = arith.constant 0 : i32
    return %c0_i32, %c0_i32_0 : i32, i32
  }
  func.func @transform_3(%arg0: i32) -> (i32, i32) {
    %c0_i32 = arith.constant 0 : i32
    %c0_i32_0 = arith.constant 0 : i32
    %c0_i32_1 = arith.constant 0 : i32
    return %c0_i32, %c0_i32_0 : i32, i32
  }
  func.func @transform_4(%arg0: i32) -> (i32, i32) {
    %c0_i32 = arith.constant 0 : i32
    %c0_i32_0 = arith.constant 0 : i32
    %c0_i32_1 = arith.constant 0 : i32
    return %c0_i32, %c0_i32_0 : i32, i32
  }
  func.func @transform_5(%arg0: i32) -> (i32, i32) {
    %c0_i32 = arith.constant 0 : i32
    %c0_i32_0 = arith.constant 0 : i32
    %c0_i32_1 = arith.constant 0 : i32
    return %c0_i32, %c0_i32_0 : i32, i32
  }
  func.func @transform_6(%arg0: i32) -> (i32, i32) {
    %c0_i32 = arith.constant 0 : i32
    %c0_i32_0 = arith.constant 0 : i32
    %c0_i32_1 = arith.constant 0 : i32
    return %c0_i32, %c0_i32_0 : i32, i32
  }
  func.func @transform_7(%arg0: i32) -> (i32, i32) {
    %c0_i32 = arith.constant 0 : i32
    %c0_i32_0 = arith.constant 0 : i32
    %c0_i32_1 = arith.constant 0 : i32
    return %c0_i32, %c0_i32_0 : i32, i32
  }
  func.func @transform_8(%arg0: i32) -> (i32, i32) {
    %c0_i32 = arith.constant 0 : i32
    %c0_i32_0 = arith.constant 0 : i32
    %c0_i32_1 = arith.constant 0 : i32
    return %c0_i32, %c0_i32_0 : i32, i32
  }
  func.func @transform_9(%arg0: i32) -> (i32, i32) {
    %c0_i32 = arith.constant 0 : i32
    %c0_i32_0 = arith.constant 0 : i32
    return %arg0, %c0_i32 : i32, i32
  }
}

</mosaic_0001>

<llo_original>
// kernel: actor_critic_forward.1
$region0: #{actor_critic_forward.1}
  #allocation0 [shape = 'u32[]', space=smem, size = 0x4, offset = 0x4, fixed_abs, tag = 'smem constant byte address 0x4 - core index']
  #allocation1 [shape = 'u32[144,128]{1,0:T(1,128)}', space=vmem, size = 0x12000, scoped, tag = 'internal scratch']
  %s0 = inlined_call_operand.vmem [shape: f32[8,16], index: 0, kind: input, shape index: {}]
  %s1 = inlined_call_operand.hbm [shape: f32[16,128], index: 1, kind: input, shape index: {}]
  %s2 = inlined_call_operand.vmem [shape: f32[1,128], index: 2, kind: input, shape index: {}]
  %s3 = inlined_call_operand.hbm [shape: f32[128,128], index: 3, kind: input, shape index: {}]
  %s4 = inlined_call_operand.vmem [shape: f32[1,128], index: 4, kind: input, shape index: {}]
  %s5 = inlined_call_operand.hbm [shape: f32[128,128], index: 5, kind: input, shape index: {}]
  %s6 = inlined_call_operand.vmem [shape: f32[1,128], index: 6, kind: input, shape index: {}]
  %s7 = inlined_call_operand.hbm [shape: f32[128,128], index: 7, kind: input, shape index: {}]
  %s8 = inlined_call_operand.vmem [shape: f32[1,128], index: 8, kind: input, shape index: {}]
  %s9 = inlined_call_operand.vmem [shape: f32[8,128], index: 9, kind: output, shape index: {}]
  %s10 = sld [smem:[#allocation0]]
  $region62: #{actor_critic_forward.1} parent=0
    _
  %s12 = ssub.s32 1, %s10
  %s13 = scalar_select 0, %s12, %s10
  $region1: #{actor_critic_forward.1} parent=0
    #allocation2 [shape = 'u8[8192]{0}', space=vmem, size = 0x2000, scoped, tag = 'input window, operand 1, single buffered']
    #allocation3 [shape = 's32[1]{0}', space=sflag, size = 0x4, scoped, tag = 'scoped memory for actor_critic_forward.1']
    #allocation4 [shape = 'u8[65536]{0}', space=vmem, size = 0x10000, scoped, tag = 'input window, operand 3, single buffered']
    #allocation5 [shape = 's32[1]{0}', space=sflag, size = 0x4, scoped, tag = 'scoped memory for actor_critic_forward.1']
    #allocation6 [shape = 'u8[65536]{0}', space=vmem, size = 0x10000, scoped, tag = 'input window, operand 5, single buffered']
    #allocation7 [shape = 'u8[65536]{0}', space=vmem, size = 0x10000, scoped, tag = 'input window, operand 7, single buffered']
    #allocation8 [shape = 's32[1]{0}', space=sflag, size = 0x4, scoped, tag = 'scoped memory for actor_critic_forward.1']
    %14 = vsyncpa [#allocation3], 0
    %15 = vsyncpa [#allocation5], 0
    %16 = vsyncpa [#allocation8], 0
    // Predicated region
    $region2: #{actor_critic_forward.1} parent=1 // pred_check
      _
    $region3: #{actor_critic_forward.1} parent=1 // pred_check_branch
      %18 = sbr.rel (0) target = $region5
    $region4: #{actor_critic_forward.1} parent=1 // pred_region
      _
    $region5: #{actor_critic_forward.1} parent=1 // pred_fallthru
      _
    // Predicated region
    $region6: #{actor_critic_forward.1} parent=1 // pred_check
      _
    $region7: #{actor_critic_forward.1} parent=1 // pred_check_branch
      %20 = sbr.rel (0) target = $region9
    $region8: #{actor_critic_forward.1} parent=1 // pred_region
      %s22 = ssub.s32 256, 256
      %23 = vsyncadd [#allocation3], %s22
      %s24 = sshll.u32 [#allocation2], 4
      %s25 = int_to_ptr.vmem [resolvable:$true] %s24
      %30 = dma.hbm_to_vmem [thread:$0]  %s1, 256, %s25, [#allocation3], 128, 128, 8
    $region9: #{actor_critic_forward.1} parent=1 // pred_fallthru
      _
    // Predicated region
    $region10: #{actor_critic_forward.1} parent=1 // pred_check
      _
    $region11: #{actor_critic_forward.1} parent=1 // pred_check_branch
      %32 = sbr.rel (0) target = $region13
    $region12: #{actor_critic_forward.1} parent=1 // pred_region
      _
    $region13: #{actor_critic_forward.1} parent=1 // pred_fallthru
      _
    // Predicated region
    $region14: #{actor_critic_forward.1} parent=1 // pred_check
      _
    $region15: #{actor_critic_forward.1} parent=1 // pred_check_branch
      %34 = sbr.rel (0) target = $region17
    $region16: #{actor_critic_forward.1} parent=1 // pred_region
      %s36 = ssub.s32 2048, 2048
      %37 = vsyncadd [#allocation5], %s36
      %s38 = sshll.u32 [#allocation4], 4
      %s39 = int_to_ptr.vmem [resolvable:$true] %s38
      %44 = dma.hbm_to_vmem [thread:$0]  %s3, 2048, %s39, [#allocation5], 128, 128, 8
    $region17: #{actor_critic_forward.1} parent=1 // pred_fallthru
      _
    // Predicated region
    $region18: #{actor_critic_forward.1} parent=1 // pred_check
      _
    $region19: #{actor_critic_forward.1} parent=1 // pred_check_branch
      %46 = sbr.rel (0) target = $region21
    $region20: #{actor_critic_forward.1} parent=1 // pred_region
      _
    $region21: #{actor_critic_forward.1} parent=1 // pred_fallthru
      _
    // Predicated region
    $region22: #{actor_critic_forward.1} parent=1 // pred_check
      _
    $region23: #{actor_critic_forward.1} parent=1 // pred_check_branch
      %48 = sbr.rel (0) target = $region25
    $region24: #{actor_critic_forward.1} parent=1 // pred_region
      %s50 = ssub.s32 2048, 2048
      %51 = vsyncadd [#allocation5], %s50
      %s52 = sshll.u32 [#allocation6], 4
      %s53 = int_to_ptr.vmem [resolvable:$true] %s52
      %58 = dma.hbm_to_vmem [thread:$0]  %s5, 2048, %s53, [#allocation5], 128, 128, 8
    $region25: #{actor_critic_forward.1} parent=1 // pred_fallthru
      _
    // Predicated region
    $region26: #{actor_critic_forward.1} parent=1 // pred_check
      _
    $region27: #{actor_critic_forward.1} parent=1 // pred_check_branch
      %60 = sbr.rel (0) target = $region29
    $region28: #{actor_critic_forward.1} parent=1 // pred_region
      _
    $region29: #{actor_critic_forward.1} parent=1 // pred_fallthru
      _
    // Predicated region
    $region30: #{actor_critic_forward.1} parent=1 // pred_check
      _
    $region31: #{actor_critic_forward.1} parent=1 // pred_check_branch
      %62 = sbr.rel (0) target = $region33
    $region32: #{actor_critic_forward.1} parent=1 // pred_region
      %s64 = ssub.s32 2048, 2048
      %65 = vsyncadd [#allocation8], %s64
      %s66 = sshll.u32 [#allocation7], 4
      %s67 = int_to_ptr.vmem [resolvable:$true] %s66
      %72 = dma.hbm_to_vmem [thread:$0]  %s7, 2048, %s67, [#allocation8], 128, 128, 8
    $region33: #{actor_critic_forward.1} parent=1 // pred_fallthru
      _
    // Predicated region
    $region34: #{actor_critic_forward.1} parent=1 // pred_check
      _
    $region35: #{actor_critic_forward.1} parent=1 // pred_check_branch
      %74 = sbr.rel (0) target = $region37
    $region36: #{actor_critic_forward.1} parent=1 // pred_region
      _
    $region37: #{actor_critic_forward.1} parent=1 // pred_fallthru
      _
    // Predicated region
    $region38: #{actor_critic_forward.1} parent=1 // pred_check
      _
    $region39: #{actor_critic_forward.1} parent=1 // pred_check_branch
      %76 = sbr.rel (0) target = $region41
    $region40: #{actor_critic_forward.1} parent=1 // pred_region
      %77 = dma.done [#allocation3], 256
    $region41: #{actor_critic_forward.1} parent=1 // pred_fallthru
      _
    // Predicated region
    $region42: #{actor_critic_forward.1} parent=1 // pred_check
      _
    $region43: #{actor_critic_forward.1} parent=1 // pred_check_branch
      %79 = sbr.rel (0) target = $region45
    $region44: #{actor_critic_forward.1} parent=1 // pred_region
      %80 = dma.done [#allocation5], 2048
    $region45: #{actor_critic_forward.1} parent=1 // pred_fallthru
      _
    // Predicated region
    $region46: #{actor_critic_forward.1} parent=1 // pred_check
      _
    $region47: #{actor_critic_forward.1} parent=1 // pred_check_branch
      %82 = sbr.rel (0) target = $region49
    $region48: #{actor_critic_forward.1} parent=1 // pred_region
      %83 = dma.done [#allocation5], 2048
    $region49: #{actor_critic_forward.1} parent=1 // pred_fallthru
      _
    // Predicated region
    $region50: #{actor_critic_forward.1} parent=1 // pred_check
      _
    $region51: #{actor_critic_forward.1} parent=1 // pred_check_branch
      %85 = sbr.rel (0) target = $region53
    $region52: #{actor_critic_forward.1} parent=1 // pred_region
      %86 = dma.done [#allocation8], 2048
    $region53: #{actor_critic_forward.1} parent=1 // pred_fallthru
      _
    %v87 = vld [vmem:[%s0] sm:$0xff]
    %v88 = vld [vmem:[#allocation2] sm:$0xff]
    %v89 = vld [vmem:[#allocation2 + $0x8] sm:$0xff]
    %v90 = vld [vmem:[%s2] sm:$0x1]
    %v92 = vlaneseq
    %v93 = vshrl.u32 %v92, 7
    %v94 = vsub.s32 0, %v93
    %v95 = vrot.slane %v90, %v94
    %vm97 = vcmask 130048
    %v99 = vsel %vm97, %v87, 0
    %101 = vmatprep.subr.mxu0 0.0
    %102 = vmatpush1.msra.mxu0 %v88
    %103 = vmatprep.subr.mxu0 0.0
    %104 = vmatpush1.msra.mxu0 %v89
    %105 = vmatprep.subr.mxu0 0.0
    %106 = vmatpush1.msra.mxu0 0.0
    %107 = vmatprep.subr.mxu0 0.0
    %108 = vmatpush1.msra.mxu0 0.0
    %109 = vmatprep.subr.mxu0 0.0
    %110 = vmatpush1.msra.mxu0 0.0
    %111 = vmatprep.subr.mxu0 0.0
    %112 = vmatpush1.msra.mxu0 0.0
    %113 = vmatprep.subr.mxu0 0.0
    %114 = vmatpush1.msra.mxu0 0.0
    %115 = vmatprep.subr.mxu0 0.0
    %116 = vmatpush1.msra.mxu0 0.0
    %117 = vmatprep.subr.mxu0 0.0
    %118 = vmatpush1.msra.mxu0 0.0
    %119 = vmatprep.subr.mxu0 0.0
    %120 = vmatpush1.msra.mxu0 0.0
    %121 = vmatprep.subr.mxu0 0.0
    %122 = vmatpush1.msra.mxu0 0.0
    %123 = vmatprep.subr.mxu0 0.0
    %124 = vmatpush1.msra.mxu0 0.0
    %125 = vmatprep.subr.mxu0 0.0
    %126 = vmatpush1.msra.mxu0 0.0
    %127 = vmatprep.subr.mxu0 0.0
    %128 = vmatpush1.msra.mxu0 0.0
    %129 = vmatprep.subr.mxu0 0.0
    %130 = vmatpush1.msra.mxu0 0.0
    %131 = vmatprep.subr.mxu0 0.0
    %132 = vmatpush1.msra.mxu0 0.0
    %133 = vmatprep.subr.mxu0 0.0
    %134 = vmatpush1.msra.mxu0 0.0
    %135 = vmatprep.subr.mxu0 0.0
    %136 = vmatpush1.msra.mxu0 0.0
    %137 = vmatprep.subr.mxu0 0.0
    %138 = vmatpush1.msra.mxu0 0.0
    %139 = vmatprep.subr.mxu0 0.0
    %140 = vmatpush1.msra.mxu0 0.0
    %141 = vmatprep.subr.mxu0 0.0
    %142 = vmatpush1.msra.mxu0 0.0
    %143 = vmatprep.subr.mxu0 0.0
    %144 = vmatpush1.msra.mxu0 0.0
    %145 = vmatprep.subr.mxu0 0.0
    %146 = vmatpush1.msra.mxu0 0.0
    %147 = vmatprep.subr.mxu0 0.0
    %148 = vmatpush1.msra.mxu0 0.0
    %149 = vmatprep.subr.mxu0 0.0
    %150 = vmatpush1.msra.mxu0 0.0
    %151 = vmatprep.subr.mxu0 0.0
    %152 = vmatpush1.msra.mxu0 0.0
    %153 = vmatprep.subr.mxu0 0.0
    %154 = vmatpush1.msra.mxu0 0.0
    %155 = vmatprep.subr.mxu0 0.0
    %156 = vmatpush1.msra.mxu0 0.0
    %157 = vmatprep.subr.mxu0 0.0
    %158 = vmatpush1.msra.mxu0 0.0
    %159 = vmatprep.subr.mxu0 0.0
    %160 = vmatpush1.msra.mxu0 0.0
    %161 = vmatprep.subr.mxu0 0.0
    %162 = vmatpush1.msra.mxu0 0.0
    %163 = vmatprep.subr.mxu0 0.0
    %164 = vmatpush1.msra.mxu0 0.0
    %165 = vmatprep.mubr.f32.mxu0 0.0
    %166 = vmatmul.mubr.f32.gmra.mrb[0].mxu0 %v99
    %v167 = vpop.f32.mrb[0].mxu0
    %v168 = vadd.f32 %v95, %v167
    %v169 = vpop.f32.mrb[0].mxu0
    %170 = vdwg.mxu0
    %v171 = vmax.f32 %v168, 0.0
    %v172 = vld [vmem:[#allocation4] sm:$0xff]
    %v173 = vld [vmem:[#allocation4 + $0x8] sm:$0xff]
    %v174 = vld [vmem:[#allocation4 + $0x10] sm:$0xff]
    %v175 = vld [vmem:[#allocation4 + $0x18] sm:$0xff]
    %v176 = vld [vmem:[#allocation4 + $0x20] sm:$0xff]
    %v177 = vld [vmem:[#allocation4 + $0x28] sm:$0xff]
    %v178 = vld [vmem:[#allocation4 + $0x30] sm:$0xff]
    %v179 = vld [vmem:[#allocation4 + $0x38] sm:$0xff]
    %v180 = vld [vmem:[#allocation4 + $0x40] sm:$0xff]
    %v181 = vld [vmem:[#allocation4 + $0x48] sm:$0xff]
    %v182 = vld [vmem:[#allocation4 + $0x50] sm:$0xff]
    %v183 = vld [vmem:[#allocation4 + $0x58] sm:$0xff]
    %v184 = vld [vmem:[#allocation4 + $0x60] sm:$0xff]
    %v185 = vld [vmem:[#allocation4 + $0x68] sm:$0xff]
    %v186 = vld [vmem:[#allocation4 + $0x70] sm:$0xff]
    %v187 = vld [vmem:[#allocation4 + $0x78] sm:$0xff]
    %v188 = vld [vmem:[%s4] sm:$0x1]
    %v190 = vlaneseq
    %v191 = vshrl.u32 %v190, 7
    %v192 = vsub.s32 0, %v191
    %v193 = vrot.slane %v188, %v192
    %195 = vmatprep.subr.mxu0 0.0
    %196 = vmatpush1.msra.mxu0 %v172
    %197 = vmatprep.subr.mxu0 0.0
    %198 = vmatpush1.msra.mxu0 %v173
    %199 = vmatprep.subr.mxu0 0.0
    %200 = vmatpush1.msra.mxu0 %v174
    %201 = vmatprep.subr.mxu0 0.0
    %202 = vmatpush1.msra.mxu0 %v175
    %203 = vmatprep.subr.mxu0 0.0
    %204 = vmatpush1.msra.mxu0 %v176
    %205 = vmatprep.subr.mxu0 0.0
    %206 = vmatpush1.msra.mxu0 %v177
    %207 = vmatprep.subr.mxu0 0.0
    %208 = vmatpush1.msra.mxu0 %v178
    %209 = vmatprep.subr.mxu0 0.0
    %210 = vmatpush1.msra.mxu0 %v179
    %211 = vmatprep.subr.mxu0 0.0
    %212 = vmatpush1.msra.mxu0 %v180
    %213 = vmatprep.subr.mxu0 0.0
    %214 = vmatpush1.msra.mxu0 %v181
    %215 = vmatprep.subr.mxu0 0.0
    %216 = vmatpush1.msra.mxu0 %v182
    %217 = vmatprep.subr.mxu0 0.0
    %218 = vmatpush1.msra.mxu0 %v183
    %219 = vmatprep.subr.mxu0 0.0
    %220 = vmatpush1.msra.mxu0 %v184
    %221 = vmatprep.subr.mxu0 0.0
    %222 = vmatpush1.msra.mxu0 %v185
    %223 = vmatprep.subr.mxu0 0.0
    %224 = vmatpush1.msra.mxu0 %v186
    %225 = vmatprep.subr.mxu0 0.0
    %226 = vmatpush1.msra.mxu0 %v187
    %227 = vmatprep.subr.mxu0 0.0
    %228 = vmatpush1.msra.mxu0 0.0
    %229 = vmatprep.subr.mxu0 0.0
    %230 = vmatpush1.msra.mxu0 0.0
    %231 = vmatprep.subr.mxu0 0.0
    %232 = vmatpush1.msra.mxu0 0.0
    %233 = vmatprep.subr.mxu0 0.0
    %234 = vmatpush1.msra.mxu0 0.0
    %235 = vmatprep.subr.mxu0 0.0
    %236 = vmatpush1.msra.mxu0 0.0
    %237 = vmatprep.subr.mxu0 0.0
    %238 = vmatpush1.msra.mxu0 0.0
    %239 = vmatprep.subr.mxu0 0.0
    %240 = vmatpush1.msra.mxu0 0.0
    %241 = vmatprep.subr.mxu0 0.0
    %242 = vmatpush1.msra.mxu0 0.0
    %243 = vmatprep.subr.mxu0 0.0
    %244 = vmatpush1.msra.mxu0 0.0
    %245 = vmatprep.subr.mxu0 0.0
    %246 = vmatpush1.msra.mxu0 0.0
    %247 = vmatprep.subr.mxu0 0.0
    %248 = vmatpush1.msra.mxu0 0.0
    %249 = vmatprep.subr.mxu0 0.0
    %250 = vmatpush1.msra.mxu0 0.0
    %251 = vmatprep.subr.mxu0 0.0
    %252 = vmatpush1.msra.mxu0 0.0
    %253 = vmatprep.subr.mxu0 0.0
    %254 = vmatpush1.msra.mxu0 0.0
    %255 = vmatprep.subr.mxu0 0.0
    %256 = vmatpush1.msra.mxu0 0.0
    %257 = vmatprep.subr.mxu0 0.0
    %258 = vmatpush1.msra.mxu0 0.0
    %259 = vmatprep.mubr.f32.mxu0 0.0
    %260 = vmatmul.mubr.f32.gmra.mrb[0].mxu0 %v171
    %v261 = vpop.f32.mrb[0].mxu0
    %v262 = vadd.f32 %v193, %v261
    %v263 = vpop.f32.mrb[0].mxu0
    %264 = vdwg.mxu0
    %v265 = vmax.f32 %v262, 0.0
    %v266 = vld [vmem:[#allocation6] sm:$0xff]
    %v267 = vld [vmem:[#allocation6 + $0x8] sm:$0xff]
    %v268 = vld [vmem:[#allocation6 + $0x10] sm:$0xff]
    %v269 = vld [vmem:[#allocation6 + $0x18] sm:$0xff]
    %v270 = vld [vmem:[#allocation6 + $0x20] sm:$0xff]
    %v271 = vld [vmem:[#allocation6 + $0x28] sm:$0xff]
    %v272 = vld [vmem:[#allocation6 + $0x30] sm:$0xff]
    %v273 = vld [vmem:[#allocation6 + $0x38] sm:$0xff]
    %v274 = vld [vmem:[#allocation6 + $0x40] sm:$0xff]
    %v275 = vld [vmem:[#allocation6 + $0x48] sm:$0xff]
    %v276 = vld [vmem:[#allocation6 + $0x50] sm:$0xff]
    %v277 = vld [vmem:[#allocation6 + $0x58] sm:$0xff]
    %v278 = vld [vmem:[#allocation6 + $0x60] sm:$0xff]
    %v279 = vld [vmem:[#allocation6 + $0x68] sm:$0xff]
    %v280 = vld [vmem:[#allocation6 + $0x70] sm:$0xff]
    %v281 = vld [vmem:[#allocation6 + $0x78] sm:$0xff]
    %v282 = vld [vmem:[%s6] sm:$0x1]
    %v284 = vlaneseq
    %v285 = vshrl.u32 %v284, 7
    %v286 = vsub.s32 0, %v285
    %v287 = vrot.slane %v282, %v286
    %289 = vmatprep.subr.mxu0 0.0
    %290 = vmatpush1.msra.mxu0 %v266
    %291 = vmatprep.subr.mxu0 0.0
    %292 = vmatpush1.msra.mxu0 %v267
    %293 = vmatprep.subr.mxu0 0.0
    %294 = vmatpush1.msra.mxu0 %v268
    %295 = vmatprep.subr.mxu0 0.0
    %296 = vmatpush1.msra.mxu0 %v269
    %297 = vmatprep.subr.mxu0 0.0
    %298 = vmatpush1.msra.mxu0 %v270
    %299 = vmatprep.subr.mxu0 0.0
    %300 = vmatpush1.msra.mxu0 %v271
    %301 = vmatprep.subr.mxu0 0.0
    %302 = vmatpush1.msra.mxu0 %v272
    %303 = vmatprep.subr.mxu0 0.0
    %304 = vmatpush1.msra.mxu0 %v273
    %305 = vmatprep.subr.mxu0 0.0
    %306 = vmatpush1.msra.mxu0 %v274
    %307 = vmatprep.subr.mxu0 0.0
    %308 = vmatpush1.msra.mxu0 %v275
    %309 = vmatprep.subr.mxu0 0.0
    %310 = vmatpush1.msra.mxu0 %v276
    %311 = vmatprep.subr.mxu0 0.0
    %312 = vmatpush1.msra.mxu0 %v277
    %313 = vmatprep.subr.mxu0 0.0
    %314 = vmatpush1.msra.mxu0 %v278
    %315 = vmatprep.subr.mxu0 0.0
    %316 = vmatpush1.msra.mxu0 %v279
    %317 = vmatprep.subr.mxu0 0.0
    %318 = vmatpush1.msra.mxu0 %v280
    %319 = vmatprep.subr.mxu0 0.0
    %320 = vmatpush1.msra.mxu0 %v281
    %321 = vmatprep.subr.mxu0 0.0
    %322 = vmatpush1.msra.mxu0 0.0
    %323 = vmatprep.subr.mxu0 0.0
    %324 = vmatpush1.msra.mxu0 0.0
    %325 = vmatprep.subr.mxu0 0.0
    %326 = vmatpush1.msra.mxu0 0.0
    %327 = vmatprep.subr.mxu0 0.0
    %328 = vmatpush1.msra.mxu0 0.0
    %329 = vmatprep.subr.mxu0 0.0
    %330 = vmatpush1.msra.mxu0 0.0
    %331 = vmatprep.subr.mxu0 0.0
    %332 = vmatpush1.msra.mxu0 0.0
    %333 = vmatprep.subr.mxu0 0.0
    %334 = vmatpush1.msra.mxu0 0.0
    %335 = vmatprep.subr.mxu0 0.0
    %336 = vmatpush1.msra.mxu0 0.0
    %337 = vmatprep.subr.mxu0 0.0
    %338 = vmatpush1.msra.mxu0 0.0
    %339 = vmatprep.subr.mxu0 0.0
    %340 = vmatpush1.msra.mxu0 0.0
    %341 = vmatprep.subr.mxu0 0.0
    %342 = vmatpush1.msra.mxu0 0.0
    %343 = vmatprep.subr.mxu0 0.0
    %344 = vmatpush1.msra.mxu0 0.0
    %345 = vmatprep.subr.mxu0 0.0
    %346 = vmatpush1.msra.mxu0 0.0
    %347 = vmatprep.subr.mxu0 0.0
    %348 = vmatpush1.msra.mxu0 0.0
    %349 = vmatprep.subr.mxu0 0.0
    %350 = vmatpush1.msra.mxu0 0.0
    %351 = vmatprep.subr.mxu0 0.0
    %352 = vmatpush1.msra.mxu0 0.0
    %353 = vmatprep.mubr.f32.mxu0 0.0
    %354 = vmatmul.mubr.f32.gmra.mrb[0].mxu0 %v265
    %v355 = vpop.f32.mrb[0].mxu0
    %v356 = vadd.f32 %v287, %v355
    %v357 = vpop.f32.mrb[0].mxu0
    %358 = vdwg.mxu0
    %v359 = vmax.f32 %v356, 0.0
    %v360 = vld [vmem:[#allocation7] sm:$0xff]
    %v361 = vld [vmem:[#allocation7 + $0x8] sm:$0xff]
    %v362 = vld [vmem:[#allocation7 + $0x10] sm:$0xff]
    %v363 = vld [vmem:[#allocation7 + $0x18] sm:$0xff]
    %v364 = vld [vmem:[#allocation7 + $0x20] sm:$0xff]
    %v365 = vld [vmem:[#allocation7 + $0x28] sm:$0xff]
    %v366 = vld [vmem:[#allocation7 + $0x30] sm:$0xff]
    %v367 = vld [vmem:[#allocation7 + $0x38] sm:$0xff]
    %v368 = vld [vmem:[#allocation7 + $0x40] sm:$0xff]
    %v369 = vld [vmem:[#allocation7 + $0x48] sm:$0xff]
    %v370 = vld [vmem:[#allocation7 + $0x50] sm:$0xff]
    %v371 = vld [vmem:[#allocation7 + $0x58] sm:$0xff]
    %v372 = vld [vmem:[#allocation7 + $0x60] sm:$0xff]
    %v373 = vld [vmem:[#allocation7 + $0x68] sm:$0xff]
    %v374 = vld [vmem:[#allocation7 + $0x70] sm:$0xff]
    %v375 = vld [vmem:[#allocation7 + $0x78] sm:$0xff]
    %v376 = vld [vmem:[%s8] sm:$0x1]
    %v378 = vlaneseq
    %v379 = vshrl.u32 %v378, 7
    %v380 = vsub.s32 0, %v379
    %v381 = vrot.slane %v376, %v380
    %383 = vmatprep.subr.mxu0 0.0
    %384 = vmatpush1.msra.mxu0 %v360
    %385 = vmatprep.subr.mxu0 0.0
    %386 = vmatpush1.msra.mxu0 %v361
    %387 = vmatprep.subr.mxu0 0.0
    %388 = vmatpush1.msra.mxu0 %v362
    %389 = vmatprep.subr.mxu0 0.0
    %390 = vmatpush1.msra.mxu0 %v363
    %391 = vmatprep.subr.mxu0 0.0
    %392 = vmatpush1.msra.mxu0 %v364
    %393 = vmatprep.subr.mxu0 0.0
    %394 = vmatpush1.msra.mxu0 %v365
    %395 = vmatprep.subr.mxu0 0.0
    %396 = vmatpush1.msra.mxu0 %v366
    %397 = vmatprep.subr.mxu0 0.0
    %398 = vmatpush1.msra.mxu0 %v367
    %399 = vmatprep.subr.mxu0 0.0
    %400 = vmatpush1.msra.mxu0 %v368
    %401 = vmatprep.subr.mxu0 0.0
    %402 = vmatpush1.msra.mxu0 %v369
    %403 = vmatprep.subr.mxu0 0.0
    %404 = vmatpush1.msra.mxu0 %v370
    %405 = vmatprep.subr.mxu0 0.0
    %406 = vmatpush1.msra.mxu0 %v371
    %407 = vmatprep.subr.mxu0 0.0
    %408 = vmatpush1.msra.mxu0 %v372
    %409 = vmatprep.subr.mxu0 0.0
    %410 = vmatpush1.msra.mxu0 %v373
    %411 = vmatprep.subr.mxu0 0.0
    %412 = vmatpush1.msra.mxu0 %v374
    %413 = vmatprep.subr.mxu0 0.0
    %414 = vmatpush1.msra.mxu0 %v375
    %415 = vmatprep.subr.mxu0 0.0
    %416 = vmatpush1.msra.mxu0 0.0
    %417 = vmatprep.subr.mxu0 0.0
    %418 = vmatpush1.msra.mxu0 0.0
    %419 = vmatprep.subr.mxu0 0.0
    %420 = vmatpush1.msra.mxu0 0.0
    %421 = vmatprep.subr.mxu0 0.0
    %422 = vmatpush1.msra.mxu0 0.0
    %423 = vmatprep.subr.mxu0 0.0
    %424 = vmatpush1.msra.mxu0 0.0
    %425 = vmatprep.subr.mxu0 0.0
    %426 = vmatpush1.msra.mxu0 0.0
    %427 = vmatprep.subr.mxu0 0.0
    %428 = vmatpush1.msra.mxu0 0.0
    %429 = vmatprep.subr.mxu0 0.0
    %430 = vmatpush1.msra.mxu0 0.0
    %431 = vmatprep.subr.mxu0 0.0
    %432 = vmatpush1.msra.mxu0 0.0
    %433 = vmatprep.subr.mxu0 0.0
    %434 = vmatpush1.msra.mxu0 0.0
    %435 = vmatprep.subr.mxu0 0.0
    %436 = vmatpush1.msra.mxu0 0.0
    %437 = vmatprep.subr.mxu0 0.0
    %438 = vmatpush1.msra.mxu0 0.0
    %439 = vmatprep.subr.mxu0 0.0
    %440 = vmatpush1.msra.mxu0 0.0
    %441 = vmatprep.subr.mxu0 0.0
    %442 = vmatpush1.msra.mxu0 0.0
    %443 = vmatprep.subr.mxu0 0.0
    %444 = vmatpush1.msra.mxu0 0.0
    %445 = vmatprep.subr.mxu0 0.0
    %446 = vmatpush1.msra.mxu0 0.0
    %447 = vmatprep.mubr.f32.mxu0 0.0
    %448 = vmatmul.mubr.f32.gmra.mrb[0].mxu0 %v359
    %v449 = vpop.f32.mrb[0].mxu0
    %v450 = vadd.f32 %v381, %v449
    %v451 = vpop.f32.mrb[0].mxu0
    %452 = vdwg.mxu0
    %453 = vst [vmem:[%s9] sm:$0xff] %v450
    // Predicated region
    $region54: #{actor_critic_forward.1} parent=1 // pred_check
      _
    $region55: #{actor_critic_forward.1} parent=1 // pred_check_branch
      %455 = sbr.rel (0) target = $region57
    $region56: #{actor_critic_forward.1} parent=1 // pred_region
      _
    $region57: #{actor_critic_forward.1} parent=1 // pred_fallthru
      _
    // Predicated region
    $region58: #{actor_critic_forward.1} parent=1 // pred_check
      _
    $region59: #{actor_critic_forward.1} parent=1 // pred_check_branch
      %457 = sbr.rel (0) target = $region61
    $region60: #{actor_critic_forward.1} parent=1 // pred_region
      _
    $region61: #{actor_critic_forward.1} parent=1 // pred_fallthru
      _
    %458 = vsyncpa [#allocation3], 1
    %459 = vsyncpa [#allocation5], 1
    %460 = vsyncpa [#allocation8], 1

</llo_original>
